<compile_context>
chip_gen: v7x
topology: tpu7x:2x2x1
jax: 0.10.0
libtpu: 0.0.40
codegen_flags: <defaults>
</compile_context>

<pallas_src>
import jax
import jax.numpy as jnp
from jax.experimental import pallas as pl
from jax.experimental.pallas import tpu as pltpu

_SUBLANE_BF16 = 16   # bf16 packs 16 rows per (sublane-pair) vreg


def _round_up(x, m):
    return ((x + m - 1) // m) * m


def _default_vmem_limit_bytes():
    """48 MiB is safe on 64 MiB-VMEM parts (v7x); 128 MiB parts get more."""
    try:
        kind = jax.devices()[0].device_kind.lower()
    except Exception:
        kind = ""
    if any(tag in kind for tag in ("v4", "v5", "v6")):
        return 100 << 20     # 128 MiB physical VMEM -> leave ~28 MiB headroom
    return 48 << 20          # v7x (64 MiB physical) and unknown devices


def _make_mlp_kernel(num_layers, activation, compute_dtype):
    """Kernel closed over the (static) layer count / activation / dtype."""

    def kernel(x_ref, *refs):
        # refs = (W_0..W_{L-1}, b_0..b_{L-1}, out_ref)
        w_refs = refs[:num_layers]
        b_refs = refs[num_layers:2 * num_layers]
        out_ref = refs[2 * num_layers]

        # Cast to the MXU operand dtype in VMEM (no wrapper-side HBM pass).
        x = x_ref[...].astype(compute_dtype)
        for i in range(num_layers):
            # MXU: bf16 operands, f32 accumulation.
            s = jnp.dot(x, w_refs[i][...], preferred_element_type=jnp.float32)
            s = s + b_refs[i][...]                        # (1, D) f32 broadcast
            if i != num_layers - 1:
                # Elementwise in f32, cast back to bf16 for the next MXU push.
                x = activation(s).astype(compute_dtype)
            else:
                # torch.softmax(s, dim=1): numerically stable, EXACT divide.
                m = jnp.max(s, axis=1, keepdims=True)
                e = jnp.exp(s - m)
                x = e / jnp.sum(e, axis=1, keepdims=True)
        out_ref[...] = x.astype(out_ref.dtype)            # unpadded (tile_n, C)

    return kernel


def prepare_params(weights, biases, compute_dtype=jnp.bfloat16):
    """One-time cast of parameters to the kernel operand dtypes.

    Hoisted out of the forward so repeated inference does not pay a full HBM
    read+write pass over the weights on every call.
    """
    w_c = [w.astype(compute_dtype) for w in weights]
    b_c = [b.astype(jnp.float32) for b in biases]
    return w_c, b_c


def pt_deep_forward(X, weights, biases,
                    activation=lambda s: jnp.maximum(s, 0.0),
                    tile_n=1024, compute_dtype=jnp.bfloat16,
                    vmem_limit_bytes=None):
    """Pallas equivalent of PTDeep.forward.

    X: (N, dims[0]) float (any float dtype; cast to compute_dtype in-kernel)
    weights[i]: (dims[i], dims[i+1]);  biases[i]: (1, dims[i+1])
    Returns (N, dims[-1]) float32 softmax probabilities.
    """
    num_layers = len(weights)
    N, d_in = X.shape
    out_dim = weights[-1].shape[1]
    dims = [d_in] + [w.shape[1] for w in weights]

    if vmem_limit_bytes is None:
        vmem_limit_bytes = _default_vmem_limit_bytes()

    # Parameters in operand dtypes (no-op if prepare_params was already used).
    w_c = [w if w.dtype == compute_dtype else w.astype(compute_dtype)
           for w in weights]
    b_c = [b if b.dtype == jnp.float32 else b.astype(jnp.float32)
           for b in biases]

    # ---- row tiling -------------------------------------------------------
    # Multiple of 16 (bf16 sublane packing).  No padding of X or the output:
    # Pallas handles a partial last row-block (OOB reads are never used for
    # in-bounds rows; OOB stores are dropped).
    tile_n = max(_SUBLANE_BF16, _round_up(min(tile_n, N), _SUBLANE_BF16))
    if pl.cdiv(N, tile_n) < 2 and N > _SUBLANE_BF16:
        # Give the "parallel" batch axis >= 2 steps so v7x can use both TCs.
        tile_n = max(_SUBLANE_BF16, _round_up(pl.cdiv(N, 2), _SUBLANE_BF16))

    # ---- VMEM budget check (decisive on v7x's 64 MiB) ----------------------
    itemsize = jnp.dtype(compute_dtype).itemsize
    resident_bytes = (sum(int(w.size) * itemsize for w in w_c)
                      + sum(int(b.size) * 4 for b in b_c))
    max_dim = max(dims)

    def _footprint(t):
        streamed = 2 * t * (d_in + out_dim) * 4      # double-buffered X/out tiles
        acts = t * max_dim * (4 + itemsize)          # f32 + bf16 intermediates
        return 2 * resident_bytes + streamed + acts  # weights double-buffered

    while (tile_n > _SUBLANE_BF16
           and _footprint(tile_n) > int(0.75 * vmem_limit_bytes)):
        tile_n = max(_SUBLANE_BF16, _round_up(tile_n // 2, _SUBLANE_BF16))
    # TODO(synk): for MLPs whose parameters alone exceed the VMEM budget
    # (e.g. 3 x 4096^2 on v7x), stream weights with pltpu.emit_pipeline / an
    # extra feature-dim grid axis instead of keeping them fully resident.

    grid = (pl.cdiv(N, tile_n),)

    kernel = _make_mlp_kernel(num_layers, activation, compute_dtype)

    # X / out tiled over the batch grid (last block dim == full array dim, so
    # no feature padding needed); weights & biases resident (same block index
    # every step -> DMA'd once, never re-fetched).
    in_specs = [pl.BlockSpec((tile_n, d_in), lambda i: (i, 0))]
    in_specs += [pl.BlockSpec(w.shape, lambda i: (0, 0)) for w in w_c]
    in_specs += [pl.BlockSpec(b.shape, lambda i: (0, 0)) for b in b_c]
    out_spec = pl.BlockSpec((tile_n, out_dim), lambda i: (i, 0))

    flops = 2 * N * sum(dims[i] * dims[i + 1] for i in range(num_layers))
    transcendentals = N * out_dim                      # exp in the softmax
    bytes_accessed = (int(X.size) * X.dtype.itemsize
                      + resident_bytes
                      + N * out_dim * 4)

    fwd = pl.pallas_call(
        kernel,
        out_shape=jax.ShapeDtypeStruct((N, out_dim), jnp.float32),
        grid=grid,
        in_specs=in_specs,
        out_specs=out_spec,
        compiler_params=pltpu.CompilerParams(
            dimension_semantics=("parallel",),   # shard row tiles across TCs
            vmem_limit_bytes=int(vmem_limit_bytes),
        ),
        cost_estimate=pl.CostEstimate(
            flops=int(flops),
            transcendentals=int(transcendentals),
            bytes_accessed=int(bytes_accessed)),
    )
    return fwd(X, *w_c, *b_c)


def init_params(key, dims):
    """Deterministic init mirroring PTDeep.__init__: W ~ N(0, 1), b = 0."""
    weights, biases = [], []
    for i in range(1, len(dims)):
        key, sub = jax.random.split(key)
        W = jax.random.normal(sub, (dims[i - 1], dims[i]), dtype=jnp.float32)
        b = jnp.zeros((1, dims[i]), dtype=jnp.float32)
        weights.append(W)
        biases.append(b)
    return weights, biases


# TODO(synk): get_loss (NLL + L2) and count_params are host-side utilities and
# are intentionally not implemented as kernels.

if __name__ == "__main__":
    key = jax.random.PRNGKey(0)
    dims = [16, 32, 32, 10]        # in=16, two hidden layers of 32, 10 classes
    N = 40                         # small batch -> tile_n=32, 2 grid steps

    key, kx = jax.random.split(key)
    X = jax.random.normal(kx, (N, dims[0]), dtype=jnp.float32)
    weights, biases = init_params(key, dims)

    # One-time parameter cast (hoisted out of the forward).
    w_bf16, b_f32 = prepare_params(weights, biases)

    out = pt_deep_forward(X, w_bf16, b_f32)
    out = jax.block_until_ready(out)

    # Reference with the same bf16-operand / f32-accumulate semantics.
    x_ref = X.astype(jnp.bfloat16)
    for i in range(len(weights)):
        s = jnp.dot(x_ref, weights[i].astype(jnp.bfloat16),
                    preferred_element_type=jnp.float32) + biases[i]
        if i != len(weights) - 1:
            x_ref = jnp.maximum(s, 0.0).astype(jnp.bfloat16)
        else:
            x_ref = jax.nn.softmax(s, axis=1)

    assert out.shape == (N, dims[-1]), "wrong output shape"
    assert jnp.allclose(out, x_ref, atol=2e-3, rtol=0), "mismatch vs reference"
    assert jnp.allclose(jnp.sum(out, axis=1), 1.0, atol=1e-3), \
        "softmax rows must sum to 1"

    print("KERNEL_OK")
</pallas_src>

<mosaic_0001>
module attributes {stable_mosaic.version = 11 : i64} {
  func.func @kernel(%arg0: i32, %arg1: memref<32x16xf32, #tpu.memory_space<vmem>>, %arg2: memref<16x32xbf16, #tpu.memory_space<vmem>>, %arg3: memref<32x32xbf16, #tpu.memory_space<vmem>>, %arg4: memref<32x10xbf16, #tpu.memory_space<vmem>>, %arg5: memref<1x32xf32, #tpu.memory_space<vmem>>, %arg6: memref<1x32xf32, #tpu.memory_space<vmem>>, %arg7: memref<1x10xf32, #tpu.memory_space<vmem>>, %arg8: memref<32x10xf32, #tpu.memory_space<vmem>>) attributes {dimension_semantics = [#tpu.dimension_semantics<parallel>], iteration_bounds = array<i64: 2>, scalar_prefetch = 0 : i64, scratch_operands = 0 : i64, tpu.core_type = #tpu.core_type<tc>, window_params = [{transform_indices = @transform_0, window_bounds = array<i64: 32, 16>}, {pipeline_mode = #tpu.pipeline_mode<synchronous>, transform_indices = @transform_1, window_bounds = array<i64: 16, 32>}, {pipeline_mode = #tpu.pipeline_mode<synchronous>, transform_indices = @transform_2, window_bounds = array<i64: 32, 32>}, {pipeline_mode = #tpu.pipeline_mode<synchronous>, transform_indices = @transform_3, window_bounds = array<i64: 32, 10>}, {pipeline_mode = #tpu.pipeline_mode<synchronous>, transform_indices = @transform_4, window_bounds = array<i64: 1, 32>}, {pipeline_mode = #tpu.pipeline_mode<synchronous>, transform_indices = @transform_5, window_bounds = array<i64: 1, 32>}, {pipeline_mode = #tpu.pipeline_mode<synchronous>, transform_indices = @transform_6, window_bounds = array<i64: 1, 10>}, {transform_indices = @transform_7, window_bounds = array<i64: 32, 10>}]} {
    %c0 = arith.constant 0 : index
    %c0_0 = arith.constant 0 : index
    %0 = vector.load %arg1[%c0, %c0_0] : memref<32x16xf32, #tpu.memory_space<vmem>>, vector<32x16xf32>
    %1 = arith.truncf %0 : vector<32x16xf32> to vector<32x16xbf16>
    %c0_1 = arith.constant 0 : index
    %c0_2 = arith.constant 0 : index
    %2 = vector.load %arg2[%c0_1, %c0_2] : memref<16x32xbf16, #tpu.memory_space<vmem>>, vector<16x32xbf16>
    %cst = arith.constant dense<0.000000e+00> : vector<32x32xf32>
    %3 = tpu.matmul %1, %2, %cst {dimension_numbers = #tpu.dot_dimension_numbers<[1], [0], [0], [1], [0, 0, 1, 1], [], []>} : vector<32x16xbf16>, vector<16x32xbf16>, vector<32x32xf32> -> vector<32x32xf32>
    %c0_3 = arith.constant 0 : index
    %c0_4 = arith.constant 0 : index
    %4 = vector.load %arg5[%c0_3, %c0_4] : memref<1x32xf32, #tpu.memory_space<vmem>>, vector<1x32xf32>
    %5 = vector.broadcast %4 : vector<1x32xf32> to vector<32x32xf32>
    %6 = arith.addf %3, %5 : vector<32x32xf32>
    %cst_5 = arith.constant 0.000000e+00 : f32
    %7 = vector.broadcast %cst_5 : f32 to vector<32x32xf32>
    %8 = arith.maximumf %6, %7 : vector<32x32xf32>
    %9 = arith.truncf %8 : vector<32x32xf32> to vector<32x32xbf16>
    %c0_6 = arith.constant 0 : index
    %c0_7 = arith.constant 0 : index
    %10 = vector.load %arg3[%c0_6, %c0_7] : memref<32x32xbf16, #tpu.memory_space<vmem>>, vector<32x32xbf16>
    %cst_8 = arith.constant dense<0.000000e+00> : vector<32x32xf32>
    %11 = tpu.matmul %9, %10, %cst_8 {dimension_numbers = #tpu.dot_dimension_numbers<[1], [0], [0], [1], [0, 0, 1, 1], [], []>} : vector<32x32xbf16>, vector<32x32xbf16>, vector<32x32xf32> -> vector<32x32xf32>
    %c0_9 = arith.constant 0 : index
    %c0_10 = arith.constant 0 : index
    %12 = vector.load %arg6[%c0_9, %c0_10] : memref<1x32xf32, #tpu.memory_space<vmem>>, vector<1x32xf32>
    %13 = vector.broadcast %12 : vector<1x32xf32> to vector<32x32xf32>
    %14 = arith.addf %11, %13 : vector<32x32xf32>
    %cst_11 = arith.constant 0.000000e+00 : f32
    %15 = vector.broadcast %cst_11 : f32 to vector<32x32xf32>
    %16 = arith.maximumf %14, %15 : vector<32x32xf32>
    %17 = arith.truncf %16 : vector<32x32xf32> to vector<32x32xbf16>
    %c0_12 = arith.constant 0 : index
    %c0_13 = arith.constant 0 : index
    %18 = vector.load %arg4[%c0_12, %c0_13] : memref<32x10xbf16, #tpu.memory_space<vmem>>, vector<32x10xbf16>
    %cst_14 = arith.constant dense<0.000000e+00> : vector<32x10xf32>
    %19 = tpu.matmul %17, %18, %cst_14 {dimension_numbers = #tpu.dot_dimension_numbers<[1], [0], [0], [1], [0, 0, 1, 1], [], []>} : vector<32x32xbf16>, vector<32x10xbf16>, vector<32x10xf32> -> vector<32x10xf32>
    %c0_15 = arith.constant 0 : index
    %c0_16 = arith.constant 0 : index
    %20 = vector.load %arg7[%c0_15, %c0_16] : memref<1x10xf32, #tpu.memory_space<vmem>>, vector<1x10xf32>
    %21 = vector.broadcast %20 : vector<1x10xf32> to vector<32x10xf32>
    %22 = arith.addf %19, %21 : vector<32x10xf32>
    %cst_17 = arith.constant dense<0xFF800000> : vector<32xf32>
    %23 = vector.multi_reduction <maximumf>, %22, %cst_17 [1] : vector<32x10xf32> to vector<32xf32>
    %24 = vector.shape_cast %23 : vector<32xf32> to vector<32x1xf32>
    %25 = vector.broadcast %24 : vector<32x1xf32> to vector<32x10xf32>
    %26 = arith.subf %22, %25 : vector<32x10xf32>
    %27 = math.exp %26 : vector<32x10xf32>
    %cst_18 = arith.constant dense<0.000000e+00> : vector<32xf32>
    %28 = vector.multi_reduction <add>, %27, %cst_18 [1] : vector<32x10xf32> to vector<32xf32>
    %29 = vector.shape_cast %28 : vector<32xf32> to vector<32x1xf32>
    %30 = vector.broadcast %29 : vector<32x1xf32> to vector<32x10xf32>
    %31 = arith.divf %27, %30 : vector<32x10xf32>
    %c0_19 = arith.constant 0 : index
    %c0_20 = arith.constant 0 : index
    %32 = vector.load %arg8[%c0_19, %c0_20] : memref<32x10xf32, #tpu.memory_space<vmem>>, vector<32x10xf32>
    tpu.vector_store %arg8[%c0_19, %c0_20], %31 {strides = array<i32>} : memref<32x10xf32, #tpu.memory_space<vmem>>, vector<32x10xf32>,
    return
  }
  func.func @transform_0(%arg0: i32) -> (i32, i32) {
    %c0_i32 = arith.constant 0 : i32
    %c0_i32_0 = arith.constant 0 : i32
    return %arg0, %c0_i32 : i32, i32
  }
  func.func @transform_1(%arg0: i32) -> (i32, i32) {
    %c0_i32 = arith.constant 0 : i32
    %c0_i32_0 = arith.constant 0 : i32
    %c0_i32_1 = arith.constant 0 : i32
    return %c0_i32, %c0_i32_0 : i32, i32
  }
  func.func @transform_2(%arg0: i32) -> (i32, i32) {
    %c0_i32 = arith.constant 0 : i32
    %c0_i32_0 = arith.constant 0 : i32
    %c0_i32_1 = arith.constant 0 : i32
    return %c0_i32, %c0_i32_0 : i32, i32
  }
  func.func @transform_3(%arg0: i32) -> (i32, i32) {
    %c0_i32 = arith.constant 0 : i32
    %c0_i32_0 = arith.constant 0 : i32
    %c0_i32_1 = arith.constant 0 : i32
    return %c0_i32, %c0_i32_0 : i32, i32
  }
  func.func @transform_4(%arg0: i32) -> (i32, i32) {
    %c0_i32 = arith.constant 0 : i32
    %c0_i32_0 = arith.constant 0 : i32
    %c0_i32_1 = arith.constant 0 : i32
    return %c0_i32, %c0_i32_0 : i32, i32
  }
  func.func @transform_5(%arg0: i32) -> (i32, i32) {
    %c0_i32 = arith.constant 0 : i32
    %c0_i32_0 = arith.constant 0 : i32
    %c0_i32_1 = arith.constant 0 : i32
    return %c0_i32, %c0_i32_0 : i32, i32
  }
  func.func @transform_6(%arg0: i32) -> (i32, i32) {
    %c0_i32 = arith.constant 0 : i32
    %c0_i32_0 = arith.constant 0 : i32
    %c0_i32_1 = arith.constant 0 : i32
    return %c0_i32, %c0_i32_0 : i32, i32
  }
  func.func @transform_7(%arg0: i32) -> (i32, i32) {
    %c0_i32 = arith.constant 0 : i32
    %c0_i32_0 = arith.constant 0 : i32
    return %arg0, %c0_i32 : i32, i32
  }
}

</mosaic_0001>

<llo_original>
// kernel: tpu_custom_call.1
$region0: #{tpu_custom_call.1}
  #allocation0 [shape = 'u32[]', space=smem, size = 0x4, offset = 0x4, fixed_abs, tag = 'smem constant byte address 0x4 - core index']
  #allocation1 [shape = 'u32[144,128]{1,0:T(1,128)}', space=vmem, size = 0x12000, scoped, tag = 'internal scratch']
  %s0 = inlined_call_operand.vmem [shape: f32[40,16], index: 0, kind: input, shape index: {}]
  %s1 = inlined_call_operand.vmem [shape: bf16[16,32], index: 1, kind: input, shape index: {}]
  %s2 = inlined_call_operand.vmem [shape: bf16[32,32], index: 2, kind: input, shape index: {}]
  %s3 = inlined_call_operand.vmem [shape: bf16[32,10], index: 3, kind: input, shape index: {}]
  %s4 = inlined_call_operand.vmem [shape: f32[1,32], index: 4, kind: input, shape index: {}]
  %s5 = inlined_call_operand.vmem [shape: f32[1,32], index: 5, kind: input, shape index: {}]
  %s6 = inlined_call_operand.vmem [shape: f32[1,10], index: 6, kind: input, shape index: {}]
  %s7 = inlined_call_operand.vmem [shape: f32[40,10], index: 7, kind: output, shape index: {}]
  %s8 = sld [smem:[#allocation0]]
  $region109: #{tpu_custom_call.1} parent=0
    _
  %s10 = ssub.s32 1, %s8
  %s11 = scalar_select 0, %s10, %s8
  $region1: #{tpu_custom_call.1} parent=0
    #allocation2 [shape = 'u8[32768]{0}', space=vmem, size = 0x8000, scoped, tag = 'output window, operand 0']
    loop: start=0, step=1, limit=4
    $region2: #{tpu_custom_call.1} parent=1 // loop_pre_header
      _
    $region3: #{tpu_custom_call.1} parent=1 // loop_header
      %s13 = sphi 0, %s17
      %p14 = scmp.ge.s32.totalorder %s13, 4
      %s23 = sphi 0, %s25
      %s26 = sphi 0, %s23
      %s27 = sphi 0, %s26
      %s43 = sphi 0, %s27
      %s47 = sphi 0, %s47
      %s49 = sphi 0, %s47
      %s50 = sphi 0, %s49
      %s64 = sphi 0, %s50
      %s68 = sphi 0, %s68
      %s70 = sphi 0, %s68
      %s71 = sphi 0, %s70
      %s85 = sphi 0, %s71
      %s89 = sphi 0, %s89
      %s91 = sphi 0, %s89
      %s92 = sphi 0, %s91
      %s106 = sphi 0, %s92
      %s110 = sphi 0, %s110
      %s112 = sphi 0, %s110
      %s113 = sphi 0, %s112
      %s127 = sphi 0, %s113
      %s131 = sphi 0, %s131
      %s133 = sphi 0, %s131
      %s134 = sphi 0, %s133
      %s148 = sphi 0, %s134
      %s152 = sphi 0, %s152
      %s154 = sphi 0, %s152
      %s155 = sphi 0, %s154
      %s169 = sphi 0, %s155
      %s175 = sphi 0, %s177
      %s178 = sphi 0, %s175
      %s179 = sphi 0, %s178
      %s195 = sphi 0, %s179
    $region4: #{tpu_custom_call.1} parent=1 // loop_header_branch
      %16 = sbr.rel (%p14) target = $region8
    $region5: #{tpu_custom_call.1} parent=1 // loop_body
      %s18 = ssub.s32 %s13, 1
      %s19 = ssub.s32 %s13, 2
      %s20 = sadd.s32 %s13, 1
      %s21 = ssub.s32 %s13, %s20
      %p22 = scmp.eq.s32.totalorder %s21, 0
      %s24 = sadd.s32 %s23, 1
      %s25 = scalar_select %p22, %s23, %s24
      %p28 = pneg %p22
      %p29 = scmp.eq.s32.totalorder %s13, 1
      %p30 = por %p28, %p29
      %p31 = scmp.ne.s32.totalorder %s23, %s26
      %p32 = scmp.eq.s32.totalorder %s13, 0
      %p33 = por %p31, %p32
      %p34 = scmp.ne.s32.totalorder %s23, %s26
      %p35 = scmp.eq.s32.totalorder %s18, 1
      %p36 = por %p34, %p35
      %p37 = scmp.ne.s32.totalorder %s26, %s27
      %p38 = scmp.eq.s32.totalorder %s18, 0
      %p39 = por %p37, %p38
      %p40 = scmp.ne.s32.totalorder %s26, %s27
      %p41 = scmp.eq.s32.totalorder %s19, 1
      %p42 = por %p40, %p41
      %p44 = scmp.ne.s32.totalorder %s27, %s43
      %p45 = scmp.eq.s32.totalorder %s19, 0
      %p46 = por %p44, %p45
      %s48 = sadd.s32 %s47, 1
      %p51 = scmp.eq.s32.totalorder %s13, 1
      %p52 = scmp.ne.s32.totalorder %s47, %s49
      %p53 = scmp.eq.s32.totalorder %s13, 0
      %p54 = por %p52, %p53
      %p55 = scmp.ne.s32.totalorder %s47, %s49
      %p56 = scmp.eq.s32.totalorder %s18, 1
      %p57 = por %p55, %p56
      %p58 = scmp.ne.s32.totalorder %s49, %s50
      %p59 = scmp.eq.s32.totalorder %s18, 0
      %p60 = por %p58, %p59
      %p61 = scmp.ne.s32.totalorder %s49, %s50
      %p62 = scmp.eq.s32.totalorder %s19, 1
      %p63 = por %p61, %p62
      %p65 = scmp.ne.s32.totalorder %s50, %s64
      %p66 = scmp.eq.s32.totalorder %s19, 0
      %p67 = por %p65, %p66
      %s69 = sadd.s32 %s68, 1
      %p72 = scmp.eq.s32.totalorder %s13, 1
      %p73 = scmp.ne.s32.totalorder %s68, %s70
      %p74 = scmp.eq.s32.totalorder %s13, 0
      %p75 = por %p73, %p74
      %p76 = scmp.ne.s32.totalorder %s68, %s70
      %p77 = scmp.eq.s32.totalorder %s18, 1
      %p78 = por %p76, %p77
      %p79 = scmp.ne.s32.totalorder %s70, %s71
      %p80 = scmp.eq.s32.totalorder %s18, 0
      %p81 = por %p79, %p80
      %p82 = scmp.ne.s32.totalorder %s70, %s71
      %p83 = scmp.eq.s32.totalorder %s19, 1
      %p84 = por %p82, %p83
      %p86 = scmp.ne.s32.totalorder %s71, %s85
      %p87 = scmp.eq.s32.totalorder %s19, 0
      %p88 = por %p86, %p87
      %s90 = sadd.s32 %s89, 1
      %p93 = scmp.eq.s32.totalorder %s13, 1
      %p94 = scmp.ne.s32.totalorder %s89, %s91
      %p95 = scmp.eq.s32.totalorder %s13, 0
      %p96 = por %p94, %p95
      %p97 = scmp.ne.s32.totalorder %s89, %s91
      %p98 = scmp.eq.s32.totalorder %s18, 1
      %p99 = por %p97, %p98
      %p100 = scmp.ne.s32.totalorder %s91, %s92
      %p101 = scmp.eq.s32.totalorder %s18, 0
      %p102 = por %p100, %p101
      %p103 = scmp.ne.s32.totalorder %s91, %s92
      %p104 = scmp.eq.s32.totalorder %s19, 1
      %p105 = por %p103, %p104
      %p107 = scmp.ne.s32.totalorder %s92, %s106
      %p108 = scmp.eq.s32.totalorder %s19, 0
      %p109 = por %p107, %p108
      %s111 = sadd.s32 %s110, 1
      %p114 = scmp.eq.s32.totalorder %s13, 1
      %p115 = scmp.ne.s32.totalorder %s110, %s112
      %p116 = scmp.eq.s32.totalorder %s13, 0
      %p117 = por %p115, %p116
      %p118 = scmp.ne.s32.totalorder %s110, %s112
      %p119 = scmp.eq.s32.totalorder %s18, 1
      %p120 = por %p118, %p119
      %p121 = scmp.ne.s32.totalorder %s112, %s113
      %p122 = scmp.eq.s32.totalorder %s18, 0
      %p123 = por %p121, %p122
      %p124 = scmp.ne.s32.totalorder %s112, %s113
      %p125 = scmp.eq.s32.totalorder %s19, 1
      %p126 = por %p124, %p125
      %p128 = scmp.ne.s32.totalorder %s113, %s127
      %p129 = scmp.eq.s32.totalorder %s19, 0
      %p130 = por %p128, %p129
      %s132 = sadd.s32 %s131, 1
      %p135 = scmp.eq.s32.totalorder %s13, 1
      %p136 = scmp.ne.s32.totalorder %s131, %s133
      %p137 = scmp.eq.s32.totalorder %s13, 0
      %p138 = por %p136, %p137
      %p139 = scmp.ne.s32.totalorder %s131, %s133
      %p140 = scmp.eq.s32.totalorder %s18, 1
      %p141 = por %p139, %p140
      %p142 = scmp.ne.s32.totalorder %s133, %s134
      %p143 = scmp.eq.s32.totalorder %s18, 0
      %p144 = por %p142, %p143
      %p145 = scmp.ne.s32.totalorder %s133, %s134
      %p146 = scmp.eq.s32.totalorder %s19, 1
      %p147 = por %p145, %p146
      %p149 = scmp.ne.s32.totalorder %s134, %s148
      %p150 = scmp.eq.s32.totalorder %s19, 0
      %p151 = por %p149, %p150
      %s153 = sadd.s32 %s152, 1
      %p156 = scmp.eq.s32.totalorder %s13, 1
      %p157 = scmp.ne.s32.totalorder %s152, %s154
      %p158 = scmp.eq.s32.totalorder %s13, 0
      %p159 = por %p157, %p158
      %p160 = scmp.ne.s32.totalorder %s152, %s154
      %p161 = scmp.eq.s32.totalorder %s18, 1
      %p162 = por %p160, %p161
      %p163 = scmp.ne.s32.totalorder %s154, %s155
      %p164 = scmp.eq.s32.totalorder %s18, 0
      %p165 = por %p163, %p164
      %p166 = scmp.ne.s32.totalorder %s154, %s155
      %p167 = scmp.eq.s32.totalorder %s19, 1
      %p168 = por %p166, %p167
      %p170 = scmp.ne.s32.totalorder %s155, %s169
      %p171 = scmp.eq.s32.totalorder %s19, 0
      %p172 = por %p170, %p171
      %s173 = ssub.s32 %s13, %s20
      %p174 = scmp.eq.s32.totalorder %s173, 0
      %s176 = sadd.s32 %s175, 1
      %s177 = scalar_select %p174, %s175, %s176
      %p180 = pneg %p174
      %p181 = scmp.eq.s32.totalorder %s13, 1
      %p182 = por %p180, %p181
      %p183 = scmp.ne.s32.totalorder %s175, %s178
      %p184 = scmp.eq.s32.totalorder %s13, 0
      %p185 = por %p183, %p184
      %p186 = scmp.ne.s32.totalorder %s175, %s178
      %p187 = scmp.eq.s32.totalorder %s18, 1
      %p188 = por %p186, %p187
      %p189 = scmp.ne.s32.totalorder %s178, %s179
      %p190 = scmp.eq.s32.totalorder %s18, 0
      %p191 = por %p189, %p190
      %p192 = scmp.ne.s32.totalorder %s178, %s179
      %p193 = scmp.eq.s32.totalorder %s19, 1
      %p194 = por %p192, %p193
      %p196 = scmp.ne.s32.totalorder %s179, %s195
      %p197 = scmp.eq.s32.totalorder %s19, 0
      %p198 = por %p196, %p197
      %p199 = scmp.le.s32.totalorder 1, %s13
      %p200 = scmp.lt.s32.totalorder %s13, 3
      %p201 = pnand %p199, %p200
      %p202 = pneg %p201
      // Predicated region
      $region9: #{tpu_custom_call.1} parent=5 // pred_check
        _
      $region10: #{tpu_custom_call.1} parent=5 // pred_check_branch
        %204 = sbr.rel (%p201) target = $region12
      $region11: #{tpu_custom_call.1} parent=5 // pred_region
        %s205 = ssub.s32 %s13, 1
        // Predicated region
        $region13: #{tpu_custom_call.1} parent=11 // pred_check
          %p206 = pneg %p60
        $region14: #{tpu_custom_call.1} parent=11 // pred_check_branch
          %208 = sbr.rel (%p206) target = $region16
        $region15: #{tpu_custom_call.1} parent=11 // pred_region
          _
        $region16: #{tpu_custom_call.1} parent=11 // pred_fallthru
          _
        // Predicated region
        $region17: #{tpu_custom_call.1} parent=11 // pred_check
          %p209 = pneg %p81
        $region18: #{tpu_custom_call.1} parent=11 // pred_check_branch
          %211 = sbr.rel (%p209) target = $region20
        $region19: #{tpu_custom_call.1} parent=11 // pred_region
          _
        $region20: #{tpu_custom_call.1} parent=11 // pred_fallthru
          _
        // Predicated region
        $region21: #{tpu_custom_call.1} parent=11 // pred_check
          %p212 = pneg %p102
        $region22: #{tpu_custom_call.1} parent=11 // pred_check_branch
          %214 = sbr.rel (%p212) target = $region24
        $region23: #{tpu_custom_call.1} parent=11 // pred_region
          _
        $region24: #{tpu_custom_call.1} parent=11 // pred_fallthru
          _
        // Predicated region
        $region25: #{tpu_custom_call.1} parent=11 // pred_check
          %p215 = pneg %p123
        $region26: #{tpu_custom_call.1} parent=11 // pred_check_branch
          %217 = sbr.rel (%p215) target = $region28
        $region27: #{tpu_custom_call.1} parent=11 // pred_region
          _
        $region28: #{tpu_custom_call.1} parent=11 // pred_fallthru
          _
        // Predicated region
        $region29: #{tpu_custom_call.1} parent=11 // pred_check
          %p218 = pneg %p144
        $region30: #{tpu_custom_call.1} parent=11 // pred_check_branch
          %220 = sbr.rel (%p218) target = $region32
        $region31: #{tpu_custom_call.1} parent=11 // pred_region
          _
        $region32: #{tpu_custom_call.1} parent=11 // pred_fallthru
          _
        // Predicated region
        $region33: #{tpu_custom_call.1} parent=11 // pred_check
          %p221 = pneg %p165
        $region34: #{tpu_custom_call.1} parent=11 // pred_check_branch
          %223 = sbr.rel (%p221) target = $region36
        $region35: #{tpu_custom_call.1} parent=11 // pred_region
          _
        $region36: #{tpu_custom_call.1} parent=11 // pred_fallthru
          _
      $region12: #{tpu_custom_call.1} parent=5 // pred_fallthru
        _
      %p224 = scmp.lt.s32.totalorder %s13, 2
      // Predicated region
      $region37: #{tpu_custom_call.1} parent=5 // pred_check
        %p225 = pneg %p224
      $region38: #{tpu_custom_call.1} parent=5 // pred_check_branch
        %227 = sbr.rel (%p225) target = $region40
      $region39: #{tpu_custom_call.1} parent=5 // pred_region
        // Predicated region
        $region41: #{tpu_custom_call.1} parent=39 // pred_check
          %p228 = pneg %p33
        $region42: #{tpu_custom_call.1} parent=39 // pred_check_branch
          %230 = sbr.rel (%p228) target = $region44
        $region43: #{tpu_custom_call.1} parent=39 // pred_region
          %s231 = smul.u32 4, %s13
          %s232 = ssub.s32 5, %s231
          %p233 = scmp.lt.s32.totalorder %s232, 4
          %s234 = scalar_select %p233, %s232, 4
          %s235 = smul.u32 128, %s234
          %p236 = scmp.lt.s32.totalorder %s231, 4
          %s237 = scalar_select %p236, %s231, 4
          %s238 = smul.addr %s237, 8
          %s239 = scalar_lea.vmem %s0, %s238
          %s240 = smul.u32 4, %s13
          %s241 = ssub.s32 5, %s240
          %p242 = scmp.lt.s32.totalorder %s241, 4
          %s243 = scalar_select %p242, %s241, 4
          %s244 = smul.u32 128, %s243
        $region44: #{tpu_custom_call.1} parent=39 // pred_fallthru
          _
      $region40: #{tpu_custom_call.1} parent=5 // pred_fallthru
        _
      %p245 = scmp.le.s32.totalorder 1, %s13
      %p246 = scmp.lt.s32.totalorder %s13, 3
      %p247 = pnand %p245, %p246
      %p248 = pneg %p247
      // Predicated region
      $region45: #{tpu_custom_call.1} parent=5 // pred_check
        _
      $region46: #{tpu_custom_call.1} parent=5 // pred_check_branch
        %250 = sbr.rel (%p247) target = $region48
      $region47: #{tpu_custom_call.1} parent=5 // pred_region
        %s251 = ssub.s32 %s13, 1
        %s252 = smul.u32 4, %s18
        %s253 = ssub.s32 5, %s252
        %p254 = scmp.lt.s32.totalorder %s253, 4
        %s255 = scalar_select %p254, %s253, 4
        %s256 = smul.u32 128, %s255
        %p257 = scmp.lt.s32.totalorder %s252, 4
        %s258 = scalar_select %p257, %s252, 4
        %s259 = smul.addr %s258, 8
        %s260 = scalar_lea.vmem %s0, %s259
        %p261 = pneg %p39
        %p262 = pneg %p36
        %p263 = pneg %p60
        %p264 = pneg %p57
        %p265 = pneg %p81
        %p266 = pneg %p78
        %p267 = pneg %p102
        %p268 = pneg %p99
        %p269 = pneg %p123
        %p270 = pneg %p120
        %p271 = pneg %p144
        %p272 = pneg %p141
        %p273 = pneg %p165
        %p274 = pneg %p162
        %p275 = pneg %p191
        %p276 = pneg %p188
        %s277 = sand.u32 %s178, 1
        %s278 = sand.u32 %s178, 1
        %s279 = smul.addr %s278, 32
        %s280 = scalar_lea.vmem [#allocation2], %s279
        %s281 = smul.u32 4, %s18
        %s282 = ssub.s32 5, %s281
        %p283 = scmp.lt.s32.totalorder %s282, 4
        %s284 = scalar_select %p283, %s282, 4
        %s285 = smul.u32 128, %s284
        %p286 = scmp.lt.s32.totalorder %s281, 4
        %s287 = scalar_select %p286, %s281, 4
        %s288 = smul.addr %s287, 8
        %s289 = scalar_lea.vmem %s0, %s288
        %s290 = smul.u32 4, %s18
        %s291 = ssub.s32 5, %s290
        %p292 = scmp.lt.s32.totalorder %s291, 4
        %s293 = scalar_select %p292, %s291, 4
        %s294 = smul.u32 128, %s293
        %s295 = smul.u32 4, %s18
        %s296 = ssub.s32 5, %s295
        %p297 = scmp.lt.s32.totalorder %s296, 4
        %s298 = scalar_select %p297, %s296, 4
        %s299 = smul.u32 128, %s298
        %v301 = vld [vmem:[%s289] sm:$0xff]
        %v302 = vld [vmem:[%s289 + $0x8] sm:$0xff]
        %v303 = vld [vmem:[%s289 + $0x10] sm:$0xff]
        %v304 = vld [vmem:[%s289 + $0x18] sm:$0xff]
        %v305 = vpack.c.bf16 %v302, %v301
        %v306 = vpack.c.bf16 %v304, %v303
        %v307 = vld [vmem:[%s1] sm:$0xf]
        %v308 = vld [vmem:[%s1 + $0x4] sm:$0xf]
        %v309 = vld [vmem:[%s4] sm:$0x1]
        %v311 = vlaneseq
        %v312 = vshrl.u32 %v311, 7
        %v313 = vsub.s32 0, %v312
        %v314 = vrot.slane %v309, %v313
        %v318 = vunpack.c.l.b16 %v307
        %v319 = vunpack.c.l.b16 %v308
        %v320 = vpack.c.b16 %v319, %v318
        %vm322 = vcmask 130048
        %v324 = vsel %vm322, %v305, 0
        %v327 = vsel %vm322, %v306, 0
        %329 = vmatprep.subr.bf16.mxu0 0
        %330 = vmatpush1.bf16.msra.mxu0 %v320
        %331 = vmatprep.subr.bf16.mxu0 0
        %332 = vmatpush1.bf16.msra.mxu0 0
        %333 = vmatprep.subr.bf16.mxu0 0
        %334 = vmatpush1.bf16.msra.mxu0 0
        %335 = vmatprep.subr.bf16.mxu0 0
        %336 = vmatpush1.bf16.msra.mxu0 0
        %337 = vmatprep.subr.bf16.mxu0 0
        %338 = vmatpush1.bf16.msra.mxu0 0
        %339 = vmatprep.subr.bf16.mxu0 0
        %340 = vmatpush1.bf16.msra.mxu0 0
        %341 = vmatprep.subr.bf16.mxu0 0
        %342 = vmatpush1.bf16.msra.mxu0 0
        %343 = vmatprep.subr.bf16.mxu0 0
        %344 = vmatpush1.bf16.msra.mxu0 0
        %345 = vmatprep.subr.bf16.mxu0 0
        %346 = vmatpush1.bf16.msra.mxu0 0
        %347 = vmatprep.subr.bf16.mxu0 0
        %348 = vmatpush1.bf16.msra.mxu0 0
        %349 = vmatprep.subr.bf16.mxu0 0
        %350 = vmatpush1.bf16.msra.mxu0 0
        %351 = vmatprep.subr.bf16.mxu0 0
        %352 = vmatpush1.bf16.msra.mxu0 0
        %353 = vmatprep.subr.bf16.mxu0 0
        %354 = vmatpush1.bf16.msra.mxu0 0
        %355 = vmatprep.subr.bf16.mxu0 0
        %356 = vmatpush1.bf16.msra.mxu0 0
        %357 = vmatprep.subr.bf16.mxu0 0
        %358 = vmatpush1.bf16.msra.mxu0 0
        %359 = vmatprep.subr.bf16.mxu0 0
        %360 = vmatpush1.bf16.msra.mxu0 0
        %361 = vmatprep.mubr.bf16.mxu0 0
        %362 = vmatmul.mubr.bf16.gmra.mrb[0].mxu0 %v324
        %v363 = vpop.f32.mrb[0].mxu0
        %v364 = vadd.f32 %v314, %v363
        %v365 = vpop.f32.mrb[0].mxu0
        %v366 = vpop.f32.mrb[0].mxu0
        %v367 = vadd.f32 %v314, %v366
        %v368 = vpop.f32.mrb[0].mxu0
        %369 = vmatprep.mubr.bf16.mxu0 0
        %370 = vmatmul.mubr.bf16.gmra.mrb[0].mxu0 %v327
        %v371 = vpop.f32.mrb[0].mxu0
        %v372 = vadd.f32 %v314, %v371
        %v373 = vpop.f32.mrb[0].mxu0
        %v374 = vpop.f32.mrb[0].mxu0
        %v375 = vadd.f32 %v314, %v374
        %v376 = vpop.f32.mrb[0].mxu0
        %377 = vdwg.mxu0
        %v378 = vmax.f32 %v364, 0.0
        %v379 = vmax.f32 %v367, 0.0
        %v380 = vmax.f32 %v372, 0.0
        %v381 = vmax.f32 %v375, 0.0
        %v382 = vpack.c.bf16 %v379, %v378
        %v383 = vpack.c.bf16 %v381, %v380
        %v384 = vld [vmem:[%s2] sm:$0xf]
        %v385 = vld [vmem:[%s2 + $0x4] sm:$0xf]
        %v386 = vld [vmem:[%s2 + $0x8] sm:$0xf]
        %v387 = vld [vmem:[%s2 + $0xc] sm:$0xf]
        %v388 = vld [vmem:[%s5] sm:$0x1]
        %v390 = vlaneseq
        %v391 = vshrl.u32 %v390, 7
        %v392 = vsub.s32 0, %v391
        %v393 = vrot.slane %v388, %v392
        %v399 = vunpack.c.l.b16 %v384
        %v400 = vunpack.c.l.b16 %v385
        %v401 = vunpack.c.l.b16 %v386
        %v402 = vunpack.c.l.b16 %v387
        %v403 = vpack.c.b16 %v400, %v399
        %v404 = vpack.c.b16 %v402, %v401
        %vm407 = vcmask 261120
        %v409 = vsel %vm407, %v382, 0
        %v412 = vsel %vm407, %v383, 0
        %414 = vmatprep.subr.bf16.mxu0 0
        %415 = vmatpush1.bf16.msra.mxu0 %v403
        %416 = vmatprep.subr.bf16.mxu0 0
        %417 = vmatpush1.bf16.msra.mxu0 %v404
        %418 = vmatprep.subr.bf16.mxu0 0
        %419 = vmatpush1.bf16.msra.mxu0 0
        %420 = vmatprep.subr.bf16.mxu0 0
        %421 = vmatpush1.bf16.msra.mxu0 0
        %422 = vmatprep.subr.bf16.mxu0 0
        %423 = vmatpush1.bf16.msra.mxu0 0
        %424 = vmatprep.subr.bf16.mxu0 0
        %425 = vmatpush1.bf16.msra.mxu0 0
        %426 = vmatprep.subr.bf16.mxu0 0
        %427 = vmatpush1.bf16.msra.mxu0 0
        %428 = vmatprep.subr.bf16.mxu0 0
        %429 = vmatpush1.bf16.msra.mxu0 0
        %430 = vmatprep.subr.bf16.mxu0 0
        %431 = vmatpush1.bf16.msra.mxu0 0
        %432 = vmatprep.subr.bf16.mxu0 0
        %433 = vmatpush1.bf16.msra.mxu0 0
        %434 = vmatprep.subr.bf16.mxu0 0
        %435 = vmatpush1.bf16.msra.mxu0 0
        %436 = vmatprep.subr.bf16.mxu0 0
        %437 = vmatpush1.bf16.msra.mxu0 0
        %438 = vmatprep.subr.bf16.mxu0 0
        %439 = vmatpush1.bf16.msra.mxu0 0
        %440 = vmatprep.subr.bf16.mxu0 0
        %441 = vmatpush1.bf16.msra.mxu0 0
        %442 = vmatprep.subr.bf16.mxu0 0
        %443 = vmatpush1.bf16.msra.mxu0 0
        %444 = vmatprep.subr.bf16.mxu0 0
        %445 = vmatpush1.bf16.msra.mxu0 0
        %446 = vmatprep.mubr.bf16.mxu0 0
        %447 = vmatmul.mubr.bf16.gmra.mrb[0].mxu0 %v409
        %v448 = vpop.f32.mrb[0].mxu0
        %v449 = vadd.f32 %v393, %v448
        %v450 = vpop.f32.mrb[0].mxu0
        %v451 = vpop.f32.mrb[0].mxu0
        %v452 = vadd.f32 %v393, %v451
        %v453 = vpop.f32.mrb[0].mxu0
        %454 = vmatprep.mubr.bf16.mxu0 0
        %455 = vmatmul.mubr.bf16.gmra.mrb[0].mxu0 %v412
        %v456 = vpop.f32.mrb[0].mxu0
        %v457 = vadd.f32 %v393, %v456
        %v458 = vpop.f32.mrb[0].mxu0
        %v459 = vpop.f32.mrb[0].mxu0
        %v460 = vadd.f32 %v393, %v459
        %v461 = vpop.f32.mrb[0].mxu0
        %462 = vdwg.mxu0
        %v463 = vmax.f32 %v449, 0.0
        %v464 = vmax.f32 %v452, 0.0
        %v465 = vmax.f32 %v457, 0.0
        %v466 = vmax.f32 %v460, 0.0
        %v467 = vpack.c.bf16 %v464, %v463
        %v468 = vpack.c.bf16 %v466, %v465
        %v469 = vld [vmem:[%s3] sm:$0xf]
        %v470 = vld [vmem:[%s3 + $0x4] sm:$0xf]
        %v471 = vld [vmem:[%s3 + $0x8] sm:$0xf]
        %v472 = vld [vmem:[%s3 + $0xc] sm:$0xf]
        %v473 = vld [vmem:[%s6] sm:$0x1]
        %v475 = vlaneseq
        %v476 = vshrl.u32 %v475, 7
        %v477 = vsub.s32 0, %v476
        %v478 = vrot.slane %v473, %v477
        %v484 = vunpack.c.l.b16 %v469
        %v485 = vunpack.c.l.b16 %v470
        %v486 = vunpack.c.l.b16 %v471
        %v487 = vunpack.c.l.b16 %v472
        %v488 = vpack.c.b16 %v485, %v484
        %v489 = vpack.c.b16 %v487, %v486
        %v493 = vsel %vm407, %v467, 0
        %v496 = vsel %vm407, %v468, 0
        %498 = vmatprep.subr.bf16.mxu0 0
        %499 = vmatpush1.bf16.msra.mxu0 %v488
        %500 = vmatprep.subr.bf16.mxu0 0
        %501 = vmatpush1.bf16.msra.mxu0 %v489
        %502 = vmatprep.subr.bf16.mxu0 0
        %503 = vmatpush1.bf16.msra.mxu0 0
        %504 = vmatprep.subr.bf16.mxu0 0
        %505 = vmatpush1.bf16.msra.mxu0 0
        %506 = vmatprep.subr.bf16.mxu0 0
        %507 = vmatpush1.bf16.msra.mxu0 0
        %508 = vmatprep.subr.bf16.mxu0 0
        %509 = vmatpush1.bf16.msra.mxu0 0
        %510 = vmatprep.subr.bf16.mxu0 0
        %511 = vmatpush1.bf16.msra.mxu0 0
        %512 = vmatprep.subr.bf16.mxu0 0
        %513 = vmatpush1.bf16.msra.mxu0 0
        %514 = vmatprep.subr.bf16.mxu0 0
        %515 = vmatpush1.bf16.msra.mxu0 0
        %516 = vmatprep.subr.bf16.mxu0 0
        %517 = vmatpush1.bf16.msra.mxu0 0
        %518 = vmatprep.subr.bf16.mxu0 0
        %519 = vmatpush1.bf16.msra.mxu0 0
        %520 = vmatprep.subr.bf16.mxu0 0
        %521 = vmatpush1.bf16.msra.mxu0 0
        %522 = vmatprep.subr.bf16.mxu0 0
        %523 = vmatpush1.bf16.msra.mxu0 0
        %524 = vmatprep.subr.bf16.mxu0 0
        %525 = vmatpush1.bf16.msra.mxu0 0
        %526 = vmatprep.subr.bf16.mxu0 0
        %527 = vmatpush1.bf16.msra.mxu0 0
        %528 = vmatprep.subr.bf16.mxu0 0
        %529 = vmatpush1.bf16.msra.mxu0 0
        %530 = vmatprep.mubr.bf16.mxu0 0
        %531 = vmatmul.mubr.bf16.gmra.mrb[0].mxu0 %v493
        %v532 = vpop.f32.mrb[0].mxu0
        %v533 = vadd.f32 %v478, %v532
        %v534 = vpop.f32.mrb[0].mxu0
        %v535 = vpop.f32.mrb[0].mxu0
        %v536 = vadd.f32 %v478, %v535
        %v537 = vpop.f32.mrb[0].mxu0
        %538 = vmatprep.mubr.bf16.mxu0 0
        %539 = vmatmul.mubr.bf16.gmra.mrb[0].mxu0 %v496
        %v540 = vpop.f32.mrb[0].mxu0
        %v541 = vadd.f32 %v478, %v540
        %v542 = vpop.f32.mrb[0].mxu0
        %v543 = vpop.f32.mrb[0].mxu0
        %v544 = vadd.f32 %v478, %v543
        %v545 = vpop.f32.mrb[0].mxu0
        %546 = vdwg.mxu0
        %vm547 = vcmask 80896
        %v548 = vsel %vm547, %v533, -inf
        %549 = vmax.xlane.f32.xlu0 %v548
        %v550 = vpop.xlane.xlu0 %549
        %v551 = vsel %vm547, %v536, -inf
        %552 = vmax.xlane.f32.xlu0 %v551
        %v553 = vpop.xlane.xlu0 %552
        %v554 = vsel %vm547, %v541, -inf
        %555 = vmax.xlane.f32.xlu0 %v554
        %v556 = vpop.xlane.xlu0 %555
        %v557 = vsel %vm547, %v544, -inf
        %558 = vmax.xlane.f32.xlu0 %v557
        %v559 = vpop.xlane.xlu0 %558
        %v560 = vsub.f32 %v533, %v550
        %v561 = vsub.f32 %v536, %v553
        %v562 = vsub.f32 %v541, %v556
        %v563 = vsub.f32 %v544, %v559
        %v564 = vmul.f32 %v560, 1.442695
        %v565 = vpow.pop %v564
        %v566 = vmul.f32 %v561, 1.442695
        %v567 = vpow.pop %v566
        %v568 = vmul.f32 %v562, 1.442695
        %v569 = vpow.pop %v568
        %v570 = vmul.f32 %v563, 1.442695
        %v571 = vpow.pop %v570
        %v572 = vsel %vm547, %v565, 0.0
        %573 = vadd.xlane.f32.xlu0 %v572
        %v574 = vpop.xlane.xlu0 %573
        %v575 = vsel %vm547, %v567, 0.0
        %576 = vadd.xlane.f32.xlu0 %v575
        %v577 = vpop.xlane.xlu0 %576
        %v578 = vsel %vm547, %v569, 0.0
        %579 = vadd.xlane.f32.xlu0 %v578
        %v580 = vpop.xlane.xlu0 %579
        %v581 = vsel %vm547, %v571, 0.0
        %582 = vadd.xlane.f32.xlu0 %v581
        %v583 = vpop.xlane.xlu0 %582
        %v584 = vrcp.pop %v574
        %v585 = vmul.f32 %v565, %v584
        %v586 = vrcp.pop %v577
        %v587 = vmul.f32 %v567, %v586
        %v588 = vrcp.pop %v580
        %v589 = vmul.f32 %v569, %v588
        %v590 = vrcp.pop %v583
        %v591 = vmul.f32 %v571, %v590
        %592 = vst.msk [vmem:[%s280] sm:$0xff] %vm547, %v585
        %593 = vst.msk [vmem:[%s280 + $0x8] sm:$0xff] %vm547, %v587
        %594 = vst.msk [vmem:[%s280 + $0x10] sm:$0xff] %vm547, %v589
        %595 = vst.msk [vmem:[%s280 + $0x18] sm:$0xff] %vm547, %v591
        %s596 = sand.u32 %s178, 1
        %s597 = sand.u32 %s178, 1
        %s598 = smul.addr %s597, 32
        %s599 = scalar_lea.vmem [#allocation2], %s598
        // Predicated region
        $region49: #{tpu_custom_call.1} parent=47 // pred_check
          %p600 = pneg %p188
        $region50: #{tpu_custom_call.1} parent=47 // pred_check_branch
          %602 = sbr.rel (%p600) target = $region52
        $region51: #{tpu_custom_call.1} parent=47 // pred_region
          %s603 = smul.u32 4, %s18
          %s604 = ssub.s32 5, %s603
          %p605 = scmp.lt.s32.totalorder %s604, 4
          %s606 = scalar_select %p605, %s604, 4
          %s607 = smul.u32 128, %s606
          %p608 = scmp.ne.s32.totalorder 0, %s607
          %s609 = smul.addr %s603, 8
          %s610 = scalar_lea.vmem %s7, %s609
          // Predicated region
          $region53: #{tpu_custom_call.1} parent=51 // pred_check
            %p611 = pneg %p608
          $region54: #{tpu_custom_call.1} parent=51 // pred_check_branch
            %613 = sbr.rel (%p611) target = $region56
          $region55: #{tpu_custom_call.1} parent=51 // pred_region
            // Predicated region
            $region57: #{tpu_custom_call.1} parent=55 // pred_check
              _
            $region58: #{tpu_custom_call.1} parent=55 // pred_check_branch
              %615 = sbr.rel (0) target = $region60
            $region59: #{tpu_custom_call.1} parent=55 // pred_region
              // Predicated region
              $region79: #{tpu_custom_call.1} parent=59 // pred_check
                _
              $region80: #{tpu_custom_call.1} parent=59 // pred_check_branch
                %670 = sbr.rel (0) target = $region82
              $region81: #{tpu_custom_call.1} parent=59 // pred_region
                %s671 = sshrl.u32 %s606, 2
                // While loop
                $region83: #{tpu_custom_call.1} parent=81 // loop_pre_header
                  _
                $region84: #{tpu_custom_call.1} parent=81 // loop_header
                  %s673 = sphi 0, %s675
                  %p674 = scmp.ge.s32.totalorder %s673, %s671
                  %s678 = sphi 0, %s691
                  %s679 = sphi %s599, %s694
                  %s680 = sphi %s610, %s695
                $region85: #{tpu_custom_call.1} parent=81 // loop_header_branch
                  %677 = sbr.rel (%p674) target = $region89
                $region86: #{tpu_custom_call.1} parent=81 // loop_body
                  %v681 = vld [vmem:[%s679] sm:$0xff]
                  %682 = vst [vmem:[%s680] sm:$0xff] %v681
                  %v683 = vld [vmem:[%s679 + $0x8] sm:$0xff]
                  %684 = vst [vmem:[%s680 + $0x8] sm:$0xff] %v683
                  %v685 = vld [vmem:[%s679 + $0x10] sm:$0xff]
                  %686 = vst [vmem:[%s680 + $0x10] sm:$0xff] %v685
                  %v687 = vld [vmem:[%s679 + $0x18] sm:$0xff]
                  %688 = vst [vmem:[%s680 + $0x18] sm:$0xff] %v687
                  %s689 = sadd.s32 1, %s678
                  %p690 = scmp.ge.s32.totalorder %s689, %s671
                  %s691 = scalar_select %p690, 0, %s689
                  %s692 = smul.u32 %s691, 32
                  %s693 = smul.u32 %s691, 32
                  %s694 = scalar_lea.vmem %s599, %s692 [#allocation2]
                  %s695 = scalar_lea.vmem %s610, %s693
                $region87: #{tpu_custom_call.1} parent=81 // loop_footer
                  %s675 = sadd.s32 %s673, 1
                $region88: #{tpu_custom_call.1} parent=81 // loop_footer_branch
                  %672 = sbr.rel target = $region84
                $region89: #{tpu_custom_call.1} parent=81 // loop_exit
                  _
                %s696 = sshrl.u32 %s606, 2
                %s697 = sand.u32 %s606, 3
                %s698 = smul.u32 %s696, 4
                %s699 = smul.u32 8, %s698
                %s700 = scalar_lea.vmem %s599, %s699 [#allocation2]
                %s701 = smul.u32 8, %s698
                %s702 = scalar_lea.vmem %s610, %s701
                // While loop
                $region90: #{tpu_custom_call.1} parent=81 // loop_pre_header
                  _
                $region91: #{tpu_custom_call.1} parent=81 // loop_header
                  %s704 = sphi 0, %s706
                  %p705 = scmp.ge.s32.totalorder %s704, %s697
                  %s709 = sphi 0, %s716
                  %s710 = sphi %s700, %s719
                  %s711 = sphi %s702, %s720
                $region92: #{tpu_custom_call.1} parent=81 // loop_header_branch
                  %708 = sbr.rel (%p705) target = $region96
                $region93: #{tpu_custom_call.1} parent=81 // loop_body
                  %v712 = vld [vmem:[%s710] sm:$0xff]
                  %713 = vst [vmem:[%s711] sm:$0xff] %v712
                  %s714 = sadd.s32 1, %s709
                  %p715 = scmp.ge.s32.totalorder %s714, %s697
                  %s716 = scalar_select %p715, 0, %s714
                  %s717 = smul.u32 %s716, 8
                  %s718 = smul.u32 %s716, 8
                  %s719 = scalar_lea.vmem %s700, %s717 [#allocation2]
                  %s720 = scalar_lea.vmem %s702, %s718
                $region94: #{tpu_custom_call.1} parent=81 // loop_footer
                  %s706 = sadd.s32 %s704, 1
                $region95: #{tpu_custom_call.1} parent=81 // loop_footer_branch
                  %703 = sbr.rel target = $region91
                $region96: #{tpu_custom_call.1} parent=81 // loop_exit
                  _
              $region82: #{tpu_custom_call.1} parent=59 // pred_fallthru
                _
              // Predicated region
              $region97: #{tpu_custom_call.1} parent=59 // pred_check
                _
              $region98: #{tpu_custom_call.1} parent=59 // pred_check_branch
                %722 = sbr.rel target = $region100
              $region99: #{tpu_custom_call.1} parent=59 // pred_region
                _
              $region100: #{tpu_custom_call.1} parent=59 // pred_fallthru
                _
            $region60: #{tpu_custom_call.1} parent=55 // pred_fallthru
              _
            // Predicated region
            $region61: #{tpu_custom_call.1} parent=55 // pred_check
              _
            $region62: #{tpu_custom_call.1} parent=55 // pred_check_branch
              %617 = sbr.rel target = $region64
            $region63: #{tpu_custom_call.1} parent=55 // pred_region
              %s619 = sshrl.u32 %s606, 2
              // While loop
              $region65: #{tpu_custom_call.1} parent=63 // loop_pre_header
                _
              $region66: #{tpu_custom_call.1} parent=63 // loop_header
                %s621 = sphi 0, %s623
                %p622 = scmp.ge.s32.totalorder %s621, %s619
                %s626 = sphi 0, %s639
                %s627 = sphi %s599, %s642
                %s628 = sphi %s610, %s643
              $region67: #{tpu_custom_call.1} parent=63 // loop_header_branch
                %625 = sbr.rel (%p622) target = $region71
              $region68: #{tpu_custom_call.1} parent=63 // loop_body
                %v629 = vld [vmem:[%s627] sm:$0xff]
                %630 = vst [vmem:[%s628] sm:$0xff] %v629
                %v631 = vld [vmem:[%s627 + $0x8] sm:$0xff]
                %632 = vst [vmem:[%s628 + $0x8] sm:$0xff] %v631
                %v633 = vld [vmem:[%s627 + $0x10] sm:$0xff]
                %634 = vst [vmem:[%s628 + $0x10] sm:$0xff] %v633
                %v635 = vld [vmem:[%s627 + $0x18] sm:$0xff]
                %636 = vst [vmem:[%s628 + $0x18] sm:$0xff] %v635
                %s637 = sadd.s32 1, %s626
                %p638 = scmp.ge.s32.totalorder %s637, %s619
                %s639 = scalar_select %p638, 0, %s637
                %s640 = smul.u32 %s639, 32
                %s641 = smul.u32 %s639, 32
                %s642 = scalar_lea.vmem %s599, %s640 [#allocation2]
                %s643 = scalar_lea.vmem %s610, %s641
              $region69: #{tpu_custom_call.1} parent=63 // loop_footer
                %s623 = sadd.s32 %s621, 1
              $region70: #{tpu_custom_call.1} parent=63 // loop_footer_branch
                %620 = sbr.rel target = $region66
              $region71: #{tpu_custom_call.1} parent=63 // loop_exit
                _
              %s644 = sshrl.u32 %s606, 2
              %s645 = sand.u32 %s606, 3
              %s646 = smul.u32 %s644, 4
              %s647 = smul.u32 8, %s646
              %s648 = scalar_lea.vmem %s599, %s647 [#allocation2]
              %s649 = smul.u32 8, %s646
              %s650 = scalar_lea.vmem %s610, %s649
              // While loop
              $region72: #{tpu_custom_call.1} parent=63 // loop_pre_header
                _
              $region73: #{tpu_custom_call.1} parent=63 // loop_header
                %s652 = sphi 0, %s654
                %p653 = scmp.ge.s32.totalorder %s652, %s645
                %s657 = sphi 0, %s664
                %s658 = sphi %s648, %s667
                %s659 = sphi %s650, %s668
              $region74: #{tpu_custom_call.1} parent=63 // loop_header_branch
                %656 = sbr.rel (%p653) target = $region78
              $region75: #{tpu_custom_call.1} parent=63 // loop_body
                %v660 = vld [vmem:[%s658] sm:$0xff]
                %661 = vst [vmem:[%s659] sm:$0xff] %v660
                %s662 = sadd.s32 1, %s657
                %p663 = scmp.ge.s32.totalorder %s662, %s645
                %s664 = scalar_select %p663, 0, %s662
                %s665 = smul.u32 %s664, 8
                %s666 = smul.u32 %s664, 8
                %s667 = scalar_lea.vmem %s648, %s665 [#allocation2]
                %s668 = scalar_lea.vmem %s650, %s666
              $region76: #{tpu_custom_call.1} parent=63 // loop_footer
                %s654 = sadd.s32 %s652, 1
              $region77: #{tpu_custom_call.1} parent=63 // loop_footer_branch
                %651 = sbr.rel target = $region73
              $region78: #{tpu_custom_call.1} parent=63 // loop_exit
                _
            $region64: #{tpu_custom_call.1} parent=55 // pred_fallthru
              _
          $region56: #{tpu_custom_call.1} parent=51 // pred_fallthru
            _
          %723 = vnop
        $region52: #{tpu_custom_call.1} parent=47 // pred_fallthru
          _
      $region48: #{tpu_custom_call.1} parent=5 // pred_fallthru
        _
      %p724 = scmp.le.s32.totalorder 2, %s13
      // Predicated region
      $region101: #{tpu_custom_call.1} parent=5 // pred_check
        %p725 = pneg %p724
      $region102: #{tpu_custom_call.1} parent=5 // pred_check_branch
        %727 = sbr.rel (%p725) target = $region104
      $region103: #{tpu_custom_call.1} parent=5 // pred_region
        %s728 = ssub.s32 %s13, 2
        // Predicated region
        $region105: #{tpu_custom_call.1} parent=103 // pred_check
          %p729 = pneg %p194
        $region106: #{tpu_custom_call.1} parent=103 // pred_check_branch
          %731 = sbr.rel (%p729) target = $region108
        $region107: #{tpu_custom_call.1} parent=103 // pred_region
          %s732 = sand.u32 %s179, 1
          %s733 = sand.u32 %s179, 1
          %s734 = smul.addr %s733, 32
          %s735 = scalar_lea.vmem [#allocation2], %s734
        $region108: #{tpu_custom_call.1} parent=103 // pred_fallthru
          _
      $region104: #{tpu_custom_call.1} parent=5 // pred_fallthru
        _
    $region6: #{tpu_custom_call.1} parent=1 // loop_footer
      %s17 = sadd.s32 1, %s13
    $region7: #{tpu_custom_call.1} parent=1 // loop_footer_branch
      %12 = sbr.rel target = $region3
    $region8: #{tpu_custom_call.1} parent=1 // loop_exit
      _

</llo_original>
